<compile_context>
chip_gen: v7x
topology: tpu7x:2x2x1
jax: 0.10.0
libtpu: 0.0.40
codegen_flags: <defaults>
</compile_context>

<pallas_src>
import functools

import jax
import jax.numpy as jnp
from jax.experimental import pallas as pl
from jax.experimental.pallas import tpu as pltpu  # noqa: F401  (TPU backend)


def _fused_mlp_kernel(*refs, num_layers: int, neg_slope: float):
    """refs = (x, wt_0, b_0, ..., wt_{L-1}, b_{L-1}, out); all full VMEM tiles."""
    x_ref = refs[0]
    o_ref = refs[-1]
    h = x_ref[...].astype(jnp.float32)
    for i in range(num_layers):
        wt = refs[1 + 2 * i][...]          # (in, out), pre-transposed at prep time
        b = refs[2 + 2 * i][...]           # (1, out)
        h = jnp.dot(h, wt, preferred_element_type=jnp.float32) + b
        if i < num_layers - 1:             # LeakyReLU on hidden layers only
            h = jnp.where(h > 0, h, neg_slope * h)
    o_ref[...] = h.astype(o_ref.dtype)


def init_ann_params(layer_sizes, key):
    """nn.Linear default init: U(-1/sqrt(fan_in), +1/sqrt(fan_in)); PyTorch layout."""
    params = []
    for i in range(len(layer_sizes) - 1):
        fan_in, fan_out = layer_sizes[i], layer_sizes[i + 1]
        key, kw, kb = jax.random.split(key, 3)
        bound = 1.0 / jnp.sqrt(jnp.float32(fan_in))
        w = jax.random.uniform(kw, (fan_out, fan_in), jnp.float32, -bound, bound)
        b = jax.random.uniform(kb, (fan_out,), jnp.float32, -bound, bound)
        params.append((w, b))
    return params


def prepare_fused_params(params):
    """One-time prep: transpose weights to (in, out); no padding (full-array blocks)."""
    prepared = []
    for w, b in params:
        prepared.append((jnp.asarray(w.T, jnp.float32), b.reshape(1, -1).astype(jnp.float32)))
    return prepared


def ann_forward_fused(x, prepared, out_features, neg_slope=0.01):
    """x: (B, in_features) -> (B, out_features); single fused pallas_call."""
    B = x.shape[0]
    num_layers = len(prepared)

    inputs = [x]
    in_specs = [pl.BlockSpec(x.shape, lambda: (0, 0))]
    flops = 0
    bytes_accessed = x.size * 4 + B * out_features * 4
    for wt, bp in prepared:
        inputs += [wt, bp]
        in_specs += [
            pl.BlockSpec(wt.shape, lambda: (0, 0)),
            pl.BlockSpec(bp.shape, lambda: (0, 0)),
        ]
        flops += 2 * B * wt.shape[0] * wt.shape[1]
        bytes_accessed += (wt.size + bp.size) * 4

    kernel = functools.partial(
        _fused_mlp_kernel, num_layers=num_layers, neg_slope=neg_slope
    )
    return pl.pallas_call(
        kernel,
        out_shape=jax.ShapeDtypeStruct((B, out_features), x.dtype),
        in_specs=in_specs,
        out_specs=pl.BlockSpec((B, out_features), lambda: (0, 0)),
        cost_estimate=pl.CostEstimate(
            flops=flops, transcendentals=0, bytes_accessed=bytes_accessed
        ),
    )(*inputs)


def ann_reference(x, params):
    """Pure-JAX reference identical to ANNModel.forward."""
    n = len(params)
    for i, (w, b) in enumerate(params):
        x = x @ w.T + b
        if i < n - 1:
            x = jnp.where(x > 0, x, 0.01 * x)
    return x


if __name__ == "__main__":
    key = jax.random.PRNGKey(0)
    layer_sizes = [32, 64, 48, 16]   # small MLP consistent with ANNModel([...])
    batch = 8

    kx, kp = jax.random.split(key)
    x = jax.random.normal(kx, (batch, layer_sizes[0]), jnp.float32)
    params = init_ann_params(layer_sizes, kp)

    # One-time weight prep (transpose only), done outside the forward.
    prepared = prepare_fused_params(params)

    out = ann_forward_fused(x, prepared, layer_sizes[-1])
    out = jax.block_until_ready(out)

    ref = ann_reference(x, params)
    assert out.shape == (batch, layer_sizes[-1])
    assert jnp.allclose(out, ref, atol=1e-4, rtol=1e-4), "mismatch vs reference"

    print("KERNEL_OK")
</pallas_src>

<mosaic_0001>
module attributes {stable_mosaic.version = 11 : i64} {
  func.func @_fused_mlp_kernel(%arg0: memref<8x32xf32, #tpu.memory_space<vmem>>, %arg1: memref<32x64xf32, #tpu.memory_space<vmem>>, %arg2: memref<1x64xf32, #tpu.memory_space<vmem>>, %arg3: memref<64x48xf32, #tpu.memory_space<vmem>>, %arg4: memref<1x48xf32, #tpu.memory_space<vmem>>, %arg5: memref<48x16xf32, #tpu.memory_space<vmem>>, %arg6: memref<1x16xf32, #tpu.memory_space<vmem>>, %arg7: memref<8x16xf32, #tpu.memory_space<vmem>>) attributes {dimension_semantics = [], scalar_prefetch = 0 : i64, scratch_operands = 0 : i64, tpu.core_type = #tpu.core_type<tc>} {
    %c0 = arith.constant 0 : index
    %c0_0 = arith.constant 0 : index
    %0 = vector.load %arg0[%c0, %c0_0] : memref<8x32xf32, #tpu.memory_space<vmem>>, vector<8x32xf32>
    %c0_1 = arith.constant 0 : index
    %c0_2 = arith.constant 0 : index
    %1 = vector.load %arg1[%c0_1, %c0_2] : memref<32x64xf32, #tpu.memory_space<vmem>>, vector<32x64xf32>
    %c0_3 = arith.constant 0 : index
    %c0_4 = arith.constant 0 : index
    %2 = vector.load %arg2[%c0_3, %c0_4] : memref<1x64xf32, #tpu.memory_space<vmem>>, vector<1x64xf32>
    %cst = arith.constant dense<0.000000e+00> : vector<8x64xf32>
    %3 = tpu.matmul %0, %1, %cst {dimension_numbers = #tpu.dot_dimension_numbers<[1], [0], [0], [1], [0, 0, 1, 1], [], []>} : vector<8x32xf32>, vector<32x64xf32>, vector<8x64xf32> -> vector<8x64xf32>
    %4 = vector.broadcast %2 : vector<1x64xf32> to vector<8x64xf32>
    %5 = arith.addf %3, %4 : vector<8x64xf32>
    %cst_5 = arith.constant 0.000000e+00 : f32
    %6 = vector.broadcast %cst_5 : f32 to vector<8x64xf32>
    %7 = arith.cmpf ogt, %5, %6 : vector<8x64xf32>
    %cst_6 = arith.constant 0.00999999977 : f32
    %8 = vector.broadcast %cst_6 : f32 to vector<8x64xf32>
    %9 = arith.mulf %8, %5 : vector<8x64xf32>
    %10 = arith.select %7, %5, %9 : vector<8x64xi1>, vector<8x64xf32>
    %c0_7 = arith.constant 0 : index
    %c0_8 = arith.constant 0 : index
    %11 = vector.load %arg3[%c0_7, %c0_8] : memref<64x48xf32, #tpu.memory_space<vmem>>, vector<64x48xf32>
    %c0_9 = arith.constant 0 : index
    %c0_10 = arith.constant 0 : index
    %12 = vector.load %arg4[%c0_9, %c0_10] : memref<1x48xf32, #tpu.memory_space<vmem>>, vector<1x48xf32>
    %cst_11 = arith.constant dense<0.000000e+00> : vector<8x48xf32>
    %13 = tpu.matmul %10, %11, %cst_11 {dimension_numbers = #tpu.dot_dimension_numbers<[1], [0], [0], [1], [0, 0, 1, 1], [], []>} : vector<8x64xf32>, vector<64x48xf32>, vector<8x48xf32> -> vector<8x48xf32>
    %14 = vector.broadcast %12 : vector<1x48xf32> to vector<8x48xf32>
    %15 = arith.addf %13, %14 : vector<8x48xf32>
    %cst_12 = arith.constant 0.000000e+00 : f32
    %16 = vector.broadcast %cst_12 : f32 to vector<8x48xf32>
    %17 = arith.cmpf ogt, %15, %16 : vector<8x48xf32>
    %cst_13 = arith.constant 0.00999999977 : f32
    %18 = vector.broadcast %cst_13 : f32 to vector<8x48xf32>
    %19 = arith.mulf %18, %15 : vector<8x48xf32>
    %20 = arith.select %17, %15, %19 : vector<8x48xi1>, vector<8x48xf32>
    %c0_14 = arith.constant 0 : index
    %c0_15 = arith.constant 0 : index
    %21 = vector.load %arg5[%c0_14, %c0_15] : memref<48x16xf32, #tpu.memory_space<vmem>>, vector<48x16xf32>
    %c0_16 = arith.constant 0 : index
    %c0_17 = arith.constant 0 : index
    %22 = vector.load %arg6[%c0_16, %c0_17] : memref<1x16xf32, #tpu.memory_space<vmem>>, vector<1x16xf32>
    %cst_18 = arith.constant dense<0.000000e+00> : vector<8x16xf32>
    %23 = tpu.matmul %20, %21, %cst_18 {dimension_numbers = #tpu.dot_dimension_numbers<[1], [0], [0], [1], [0, 0, 1, 1], [], []>} : vector<8x48xf32>, vector<48x16xf32>, vector<8x16xf32> -> vector<8x16xf32>
    %24 = vector.broadcast %22 : vector<1x16xf32> to vector<8x16xf32>
    %25 = arith.addf %23, %24 : vector<8x16xf32>
    %c0_19 = arith.constant 0 : index
    %c0_20 = arith.constant 0 : index
    %26 = vector.load %arg7[%c0_19, %c0_20] : memref<8x16xf32, #tpu.memory_space<vmem>>, vector<8x16xf32>
    tpu.vector_store %arg7[%c0_19, %c0_20], %25 {strides = array<i32>} : memref<8x16xf32, #tpu.memory_space<vmem>>, vector<8x16xf32>,
    return
  }
}

</mosaic_0001>

<llo_original>
// kernel: tpu_custom_call.1
$region0: #{tpu_custom_call.1}
  #allocation0 [shape = 'u32[]', space=smem, size = 0x4, offset = 0x4, fixed_abs, tag = 'smem constant byte address 0x4 - core index']
  #allocation1 [shape = 'u32[144,128]{1,0:T(1,128)}', space=vmem, size = 0x12000, scoped, tag = 'internal scratch']
  %s0 = inlined_call_operand.vmem [shape: f32[8,32], index: 0, kind: input, shape index: {}]
  %s1 = inlined_call_operand.vmem [shape: f32[32,64], index: 1, kind: input, shape index: {}]
  %s2 = inlined_call_operand.vmem [shape: f32[1,64], index: 2, kind: input, shape index: {}]
  %s3 = inlined_call_operand.vmem [shape: f32[64,48], index: 3, kind: input, shape index: {}]
  %s4 = inlined_call_operand.vmem [shape: f32[1,48], index: 4, kind: input, shape index: {}]
  %s5 = inlined_call_operand.vmem [shape: f32[48,16], index: 5, kind: input, shape index: {}]
  %s6 = inlined_call_operand.vmem [shape: f32[1,16], index: 6, kind: input, shape index: {}]
  %s7 = inlined_call_operand.hbm [shape: f32[8,16], index: 7, kind: output, shape index: {}]
  %s8 = sld [smem:[#allocation0]]
  $region38: #{tpu_custom_call.1} parent=0
    _
  %s10 = ssub.s32 1, %s8
  %s11 = scalar_select 0, %s10, %s8
  $region1: #{tpu_custom_call.1} parent=0
    #allocation2 [shape = 'u8[4096]{0}', space=vmem, size = 0x1000, scoped, tag = 'output window, operand 0, single buffered']
    #allocation3 [shape = 's32[1]{0}', space=sflag, size = 0x4, scoped, tag = 'scoped memory for tpu_custom_call.1']
    %12 = vsyncpa [#allocation3], 0
    // Predicated region
    $region2: #{tpu_custom_call.1} parent=1 // pred_check
      _
    $region3: #{tpu_custom_call.1} parent=1 // pred_check_branch
      %14 = sbr.rel (0) target = $region5
    $region4: #{tpu_custom_call.1} parent=1 // pred_region
      _
    $region5: #{tpu_custom_call.1} parent=1 // pred_fallthru
      _
    // Predicated region
    $region6: #{tpu_custom_call.1} parent=1 // pred_check
      _
    $region7: #{tpu_custom_call.1} parent=1 // pred_check_branch
      %16 = sbr.rel (0) target = $region9
    $region8: #{tpu_custom_call.1} parent=1 // pred_region
      _
    $region9: #{tpu_custom_call.1} parent=1 // pred_fallthru
      _
    // Predicated region
    $region10: #{tpu_custom_call.1} parent=1 // pred_check
      _
    $region11: #{tpu_custom_call.1} parent=1 // pred_check_branch
      %18 = sbr.rel (0) target = $region13
    $region12: #{tpu_custom_call.1} parent=1 // pred_region
      _
    $region13: #{tpu_custom_call.1} parent=1 // pred_fallthru
      _
    // Predicated region
    $region14: #{tpu_custom_call.1} parent=1 // pred_check
      _
    $region15: #{tpu_custom_call.1} parent=1 // pred_check_branch
      %20 = sbr.rel (0) target = $region17
    $region16: #{tpu_custom_call.1} parent=1 // pred_region
      _
    $region17: #{tpu_custom_call.1} parent=1 // pred_fallthru
      _
    // Predicated region
    $region18: #{tpu_custom_call.1} parent=1 // pred_check
      _
    $region19: #{tpu_custom_call.1} parent=1 // pred_check_branch
      %22 = sbr.rel (0) target = $region21
    $region20: #{tpu_custom_call.1} parent=1 // pred_region
      _
    $region21: #{tpu_custom_call.1} parent=1 // pred_fallthru
      _
    // Predicated region
    $region22: #{tpu_custom_call.1} parent=1 // pred_check
      _
    $region23: #{tpu_custom_call.1} parent=1 // pred_check_branch
      %24 = sbr.rel (0) target = $region25
    $region24: #{tpu_custom_call.1} parent=1 // pred_region
      _
    $region25: #{tpu_custom_call.1} parent=1 // pred_fallthru
      _
    // Predicated region
    $region26: #{tpu_custom_call.1} parent=1 // pred_check
      _
    $region27: #{tpu_custom_call.1} parent=1 // pred_check_branch
      %26 = sbr.rel (0) target = $region29
    $region28: #{tpu_custom_call.1} parent=1 // pred_region
      _
    $region29: #{tpu_custom_call.1} parent=1 // pred_fallthru
      _
    %v27 = vld [vmem:[%s0] sm:$0xff]
    %v28 = vld [vmem:[%s1] sm:$0xff]
    %v29 = vld [vmem:[%s1 + $0x8] sm:$0xff]
    %v30 = vld [vmem:[%s1 + $0x10] sm:$0xff]
    %v31 = vld [vmem:[%s1 + $0x18] sm:$0xff]
    %v32 = vld [vmem:[%s2] sm:$0x1]
    %v34 = vlaneseq
    %v35 = vshrl.u32 %v34, 7
    %v36 = vsub.s32 0, %v35
    %v37 = vrot.slane %v32, %v36
    %vm39 = vcmask 261120
    %v41 = vsel %vm39, %v27, 0
    %43 = vmatprep.subr.mxu0 0.0
    %44 = vmatpush1.msra.mxu0 %v28
    %45 = vmatprep.subr.mxu0 0.0
    %46 = vmatpush1.msra.mxu0 %v29
    %47 = vmatprep.subr.mxu0 0.0
    %48 = vmatpush1.msra.mxu0 %v30
    %49 = vmatprep.subr.mxu0 0.0
    %50 = vmatpush1.msra.mxu0 %v31
    %51 = vmatprep.subr.mxu0 0.0
    %52 = vmatpush1.msra.mxu0 0.0
    %53 = vmatprep.subr.mxu0 0.0
    %54 = vmatpush1.msra.mxu0 0.0
    %55 = vmatprep.subr.mxu0 0.0
    %56 = vmatpush1.msra.mxu0 0.0
    %57 = vmatprep.subr.mxu0 0.0
    %58 = vmatpush1.msra.mxu0 0.0
    %59 = vmatprep.subr.mxu0 0.0
    %60 = vmatpush1.msra.mxu0 0.0
    %61 = vmatprep.subr.mxu0 0.0
    %62 = vmatpush1.msra.mxu0 0.0
    %63 = vmatprep.subr.mxu0 0.0
    %64 = vmatpush1.msra.mxu0 0.0
    %65 = vmatprep.subr.mxu0 0.0
    %66 = vmatpush1.msra.mxu0 0.0
    %67 = vmatprep.subr.mxu0 0.0
    %68 = vmatpush1.msra.mxu0 0.0
    %69 = vmatprep.subr.mxu0 0.0
    %70 = vmatpush1.msra.mxu0 0.0
    %71 = vmatprep.subr.mxu0 0.0
    %72 = vmatpush1.msra.mxu0 0.0
    %73 = vmatprep.subr.mxu0 0.0
    %74 = vmatpush1.msra.mxu0 0.0
    %75 = vmatprep.subr.mxu0 0.0
    %76 = vmatpush1.msra.mxu0 0.0
    %77 = vmatprep.subr.mxu0 0.0
    %78 = vmatpush1.msra.mxu0 0.0
    %79 = vmatprep.subr.mxu0 0.0
    %80 = vmatpush1.msra.mxu0 0.0
    %81 = vmatprep.subr.mxu0 0.0
    %82 = vmatpush1.msra.mxu0 0.0
    %83 = vmatprep.subr.mxu0 0.0
    %84 = vmatpush1.msra.mxu0 0.0
    %85 = vmatprep.subr.mxu0 0.0
    %86 = vmatpush1.msra.mxu0 0.0
    %87 = vmatprep.subr.mxu0 0.0
    %88 = vmatpush1.msra.mxu0 0.0
    %89 = vmatprep.subr.mxu0 0.0
    %90 = vmatpush1.msra.mxu0 0.0
    %91 = vmatprep.subr.mxu0 0.0
    %92 = vmatpush1.msra.mxu0 0.0
    %93 = vmatprep.subr.mxu0 0.0
    %94 = vmatpush1.msra.mxu0 0.0
    %95 = vmatprep.subr.mxu0 0.0
    %96 = vmatpush1.msra.mxu0 0.0
    %97 = vmatprep.subr.mxu0 0.0
    %98 = vmatpush1.msra.mxu0 0.0
    %99 = vmatprep.subr.mxu0 0.0
    %100 = vmatpush1.msra.mxu0 0.0
    %101 = vmatprep.subr.mxu0 0.0
    %102 = vmatpush1.msra.mxu0 0.0
    %103 = vmatprep.subr.mxu0 0.0
    %104 = vmatpush1.msra.mxu0 0.0
    %105 = vmatprep.subr.mxu0 0.0
    %106 = vmatpush1.msra.mxu0 0.0
    %107 = vmatprep.mubr.f32.mxu0 0.0
    %108 = vmatmul.mubr.f32.gmra.mrb[0].mxu0 %v41
    %v109 = vpop.f32.mrb[0].mxu0
    %v110 = vadd.f32 %v37, %v109
    %v111 = vpop.f32.mrb[0].mxu0
    %112 = vdwg.mxu0
    %vm113 = vcmp.gt.f32.partialorder %v110, 0.0
    %v114 = vmul.f32 %v110, 0.01
    %v115 = vsel %vm113, %v110, %v114
    %v116 = vld [vmem:[%s3] sm:$0xff]
    %v117 = vld [vmem:[%s3 + $0x8] sm:$0xff]
    %v118 = vld [vmem:[%s3 + $0x10] sm:$0xff]
    %v119 = vld [vmem:[%s3 + $0x18] sm:$0xff]
    %v120 = vld [vmem:[%s3 + $0x20] sm:$0xff]
    %v121 = vld [vmem:[%s3 + $0x28] sm:$0xff]
    %v122 = vld [vmem:[%s3 + $0x30] sm:$0xff]
    %v123 = vld [vmem:[%s3 + $0x38] sm:$0xff]
    %v124 = vld [vmem:[%s4] sm:$0x1]
    %v126 = vlaneseq
    %v127 = vshrl.u32 %v126, 7
    %v128 = vsub.s32 0, %v127
    %v129 = vrot.slane %v124, %v128
    %vm131 = vcmask 523264
    %v133 = vsel %vm131, %v115, 0
    %135 = vmatprep.subr.mxu0 0.0
    %136 = vmatpush1.msra.mxu0 %v116
    %137 = vmatprep.subr.mxu0 0.0
    %138 = vmatpush1.msra.mxu0 %v117
    %139 = vmatprep.subr.mxu0 0.0
    %140 = vmatpush1.msra.mxu0 %v118
    %141 = vmatprep.subr.mxu0 0.0
    %142 = vmatpush1.msra.mxu0 %v119
    %143 = vmatprep.subr.mxu0 0.0
    %144 = vmatpush1.msra.mxu0 %v120
    %145 = vmatprep.subr.mxu0 0.0
    %146 = vmatpush1.msra.mxu0 %v121
    %147 = vmatprep.subr.mxu0 0.0
    %148 = vmatpush1.msra.mxu0 %v122
    %149 = vmatprep.subr.mxu0 0.0
    %150 = vmatpush1.msra.mxu0 %v123
    %151 = vmatprep.subr.mxu0 0.0
    %152 = vmatpush1.msra.mxu0 0.0
    %153 = vmatprep.subr.mxu0 0.0
    %154 = vmatpush1.msra.mxu0 0.0
    %155 = vmatprep.subr.mxu0 0.0
    %156 = vmatpush1.msra.mxu0 0.0
    %157 = vmatprep.subr.mxu0 0.0
    %158 = vmatpush1.msra.mxu0 0.0
    %159 = vmatprep.subr.mxu0 0.0
    %160 = vmatpush1.msra.mxu0 0.0
    %161 = vmatprep.subr.mxu0 0.0
    %162 = vmatpush1.msra.mxu0 0.0
    %163 = vmatprep.subr.mxu0 0.0
    %164 = vmatpush1.msra.mxu0 0.0
    %165 = vmatprep.subr.mxu0 0.0
    %166 = vmatpush1.msra.mxu0 0.0
    %167 = vmatprep.subr.mxu0 0.0
    %168 = vmatpush1.msra.mxu0 0.0
    %169 = vmatprep.subr.mxu0 0.0
    %170 = vmatpush1.msra.mxu0 0.0
    %171 = vmatprep.subr.mxu0 0.0
    %172 = vmatpush1.msra.mxu0 0.0
    %173 = vmatprep.subr.mxu0 0.0
    %174 = vmatpush1.msra.mxu0 0.0
    %175 = vmatprep.subr.mxu0 0.0
    %176 = vmatpush1.msra.mxu0 0.0
    %177 = vmatprep.subr.mxu0 0.0
    %178 = vmatpush1.msra.mxu0 0.0
    %179 = vmatprep.subr.mxu0 0.0
    %180 = vmatpush1.msra.mxu0 0.0
    %181 = vmatprep.subr.mxu0 0.0
    %182 = vmatpush1.msra.mxu0 0.0
    %183 = vmatprep.subr.mxu0 0.0
    %184 = vmatpush1.msra.mxu0 0.0
    %185 = vmatprep.subr.mxu0 0.0
    %186 = vmatpush1.msra.mxu0 0.0
    %187 = vmatprep.subr.mxu0 0.0
    %188 = vmatpush1.msra.mxu0 0.0
    %189 = vmatprep.subr.mxu0 0.0
    %190 = vmatpush1.msra.mxu0 0.0
    %191 = vmatprep.subr.mxu0 0.0
    %192 = vmatpush1.msra.mxu0 0.0
    %193 = vmatprep.subr.mxu0 0.0
    %194 = vmatpush1.msra.mxu0 0.0
    %195 = vmatprep.subr.mxu0 0.0
    %196 = vmatpush1.msra.mxu0 0.0
    %197 = vmatprep.subr.mxu0 0.0
    %198 = vmatpush1.msra.mxu0 0.0
    %199 = vmatprep.mubr.f32.mxu0 0.0
    %200 = vmatmul.mubr.f32.gmra.mrb[0].mxu0 %v133
    %v201 = vpop.f32.mrb[0].mxu0
    %v202 = vadd.f32 %v129, %v201
    %v203 = vpop.f32.mrb[0].mxu0
    %204 = vdwg.mxu0
    %vm205 = vcmp.gt.f32.partialorder %v202, 0.0
    %v206 = vmul.f32 %v202, 0.01
    %v207 = vsel %vm205, %v202, %v206
    %v208 = vld [vmem:[%s5] sm:$0xff]
    %v209 = vld [vmem:[%s5 + $0x8] sm:$0xff]
    %v210 = vld [vmem:[%s5 + $0x10] sm:$0xff]
    %v211 = vld [vmem:[%s5 + $0x18] sm:$0xff]
    %v212 = vld [vmem:[%s5 + $0x20] sm:$0xff]
    %v213 = vld [vmem:[%s5 + $0x28] sm:$0xff]
    %v214 = vld [vmem:[%s6] sm:$0x1]
    %v216 = vlaneseq
    %v217 = vshrl.u32 %v216, 7
    %v218 = vsub.s32 0, %v217
    %v219 = vrot.slane %v214, %v218
    %vm221 = vcmask 392192
    %v223 = vsel %vm221, %v207, 0
    %225 = vmatprep.subr.mxu0 0.0
    %226 = vmatpush1.msra.mxu0 %v208
    %227 = vmatprep.subr.mxu0 0.0
    %228 = vmatpush1.msra.mxu0 %v209
    %229 = vmatprep.subr.mxu0 0.0
    %230 = vmatpush1.msra.mxu0 %v210
    %231 = vmatprep.subr.mxu0 0.0
    %232 = vmatpush1.msra.mxu0 %v211
    %233 = vmatprep.subr.mxu0 0.0
    %234 = vmatpush1.msra.mxu0 %v212
    %235 = vmatprep.subr.mxu0 0.0
    %236 = vmatpush1.msra.mxu0 %v213
    %237 = vmatprep.subr.mxu0 0.0
    %238 = vmatpush1.msra.mxu0 0.0
    %239 = vmatprep.subr.mxu0 0.0
    %240 = vmatpush1.msra.mxu0 0.0
    %241 = vmatprep.subr.mxu0 0.0
    %242 = vmatpush1.msra.mxu0 0.0
    %243 = vmatprep.subr.mxu0 0.0
    %244 = vmatpush1.msra.mxu0 0.0
    %245 = vmatprep.subr.mxu0 0.0
    %246 = vmatpush1.msra.mxu0 0.0
    %247 = vmatprep.subr.mxu0 0.0
    %248 = vmatpush1.msra.mxu0 0.0
    %249 = vmatprep.subr.mxu0 0.0
    %250 = vmatpush1.msra.mxu0 0.0
    %251 = vmatprep.subr.mxu0 0.0
    %252 = vmatpush1.msra.mxu0 0.0
    %253 = vmatprep.subr.mxu0 0.0
    %254 = vmatpush1.msra.mxu0 0.0
    %255 = vmatprep.subr.mxu0 0.0
    %256 = vmatpush1.msra.mxu0 0.0
    %257 = vmatprep.subr.mxu0 0.0
    %258 = vmatpush1.msra.mxu0 0.0
    %259 = vmatprep.subr.mxu0 0.0
    %260 = vmatpush1.msra.mxu0 0.0
    %261 = vmatprep.subr.mxu0 0.0
    %262 = vmatpush1.msra.mxu0 0.0
    %263 = vmatprep.subr.mxu0 0.0
    %264 = vmatpush1.msra.mxu0 0.0
    %265 = vmatprep.subr.mxu0 0.0
    %266 = vmatpush1.msra.mxu0 0.0
    %267 = vmatprep.subr.mxu0 0.0
    %268 = vmatpush1.msra.mxu0 0.0
    %269 = vmatprep.subr.mxu0 0.0
    %270 = vmatpush1.msra.mxu0 0.0
    %271 = vmatprep.subr.mxu0 0.0
    %272 = vmatpush1.msra.mxu0 0.0
    %273 = vmatprep.subr.mxu0 0.0
    %274 = vmatpush1.msra.mxu0 0.0
    %275 = vmatprep.subr.mxu0 0.0
    %276 = vmatpush1.msra.mxu0 0.0
    %277 = vmatprep.subr.mxu0 0.0
    %278 = vmatpush1.msra.mxu0 0.0
    %279 = vmatprep.subr.mxu0 0.0
    %280 = vmatpush1.msra.mxu0 0.0
    %281 = vmatprep.subr.mxu0 0.0
    %282 = vmatpush1.msra.mxu0 0.0
    %283 = vmatprep.subr.mxu0 0.0
    %284 = vmatpush1.msra.mxu0 0.0
    %285 = vmatprep.subr.mxu0 0.0
    %286 = vmatpush1.msra.mxu0 0.0
    %287 = vmatprep.subr.mxu0 0.0
    %288 = vmatpush1.msra.mxu0 0.0
    %289 = vmatprep.mubr.f32.mxu0 0.0
    %290 = vmatmul.mubr.f32.gmra.mrb[0].mxu0 %v223
    %v291 = vpop.f32.mrb[0].mxu0
    %v292 = vadd.f32 %v219, %v291
    %v293 = vpop.f32.mrb[0].mxu0
    %294 = vdwg.mxu0
    %vm295 = vcmask 130048
    %296 = vst.msk [vmem:[#allocation2] sm:$0xff] %vm295, %v292
    // Predicated region
    $region30: #{tpu_custom_call.1} parent=1 // pred_check
      _
    $region31: #{tpu_custom_call.1} parent=1 // pred_check_branch
      %298 = sbr.rel (0) target = $region33
    $region32: #{tpu_custom_call.1} parent=1 // pred_region
      %s300 = ssub.s32 128, 128
      %301 = vsyncadd [#allocation3], %s300
      %s303 = sshll.u32 [#allocation2], 4
      %s304 = int_to_ptr.vmem [resolvable:$true] %s303
      %306 = dma.vmem_to_hbm [thread:$0]  %s304, 128, %s7, [#allocation3]
    $region33: #{tpu_custom_call.1} parent=1 // pred_fallthru
      _
    // Predicated region
    $region34: #{tpu_custom_call.1} parent=1 // pred_check
      _
    $region35: #{tpu_custom_call.1} parent=1 // pred_check_branch
      %308 = sbr.rel (0) target = $region37
    $region36: #{tpu_custom_call.1} parent=1 // pred_region
      %309 = dma.done [#allocation3], 128
    $region37: #{tpu_custom_call.1} parent=1 // pred_fallthru
      _
    %310 = vsyncpa [#allocation3], 1

</llo_original>
